<compile_context>
chip_gen: v6e
topology: v6e:2x2x1
jax: 0.10.0
libtpu: 0.0.40
codegen_flags: <defaults>
</compile_context>

<pallas_src>
import functools

import jax
import jax.numpy as jnp
from jax.experimental import pallas as pl
from jax.experimental.pallas import tpu as pltpu


def _round_up(x, m):
    return ((x + m - 1) // m) * m


def crystal_gcn_kernel(src_ref, dst_ref, node_ref, edge_ref,
                       wn_ref, bn_ref, we_ref, be_ref, wo_ref, bo_ref,
                       out_ref, node_t_ref, acc_ref):
    e = pl.program_id(1)
    n_blk = acc_ref.shape[0]
    e_blk = src_ref.shape[0]
    n_pad = node_ref.shape[0]

    # Once per node block (first edge tile): transform nodes, zero accumulator.
    @pl.when(e == 0)
    def _init():
        node_t = jnp.dot(node_ref[...], wn_ref[...],
                         preferred_element_type=jnp.float32) + bn_ref[...]
        node_t_ref[...] = node_t.astype(jnp.bfloat16)
        acc_ref[...] = jnp.zeros_like(acc_ref)

    # Edge linear transform for this edge block (f32).
    edge_t = jnp.dot(edge_ref[...], we_ref[...],
                     preferred_element_type=jnp.float32) + be_ref[...]

    # Gather node_t[src] via bf16 one-hot matmul: (e_blk, n_pad) @ (n_pad, d).
    # src is a column vector (e_blk, 1); padded edges have src = -1 -> zero row.
    src_onehot = (src_ref[...] == jax.lax.broadcasted_iota(
        jnp.int32, (e_blk, n_pad), 1)).astype(jnp.bfloat16)
    gathered = jnp.dot(src_onehot, node_t_ref[...],
                       preferred_element_type=jnp.float32)

    # Per-edge messages (VPU elementwise, f32), cast once for the scatter MXU op.
    messages = (gathered * edge_t).astype(jnp.bfloat16)

    # Scatter-add into this node block: build the (n_blk, e_blk) one-hot
    # directly in transposed layout (no .T relayout). dst is a row vector.
    node_start = pl.program_id(0) * n_blk
    dst_onehot = (dst_ref[...] == (jax.lax.broadcasted_iota(
        jnp.int32, (n_blk, e_blk), 0) + node_start)).astype(jnp.bfloat16)
    acc_ref[...] += jnp.dot(dst_onehot, messages,
                            preferred_element_type=jnp.float32)

    # Last edge tile: apply the output linear transform and store.
    @pl.when(e == pl.num_programs(1) - 1)
    def _finalize():
        out_ref[...] = (jnp.dot(acc_ref[...], wo_ref[...],
                                preferred_element_type=jnp.float32)
                        + bo_ref[...]).astype(out_ref.dtype)


@functools.partial(jax.jit, static_argnames=("n_blk", "e_blk"))
def crystal_gcn_forward(node_features, edge_features, edge_indices, params,
                        *, n_blk=None, e_blk=None):
    """params: W_node, b_node, W_edge, b_edge, W_out, b_out
    (weights PyTorch-style (out, in); biases (out,))."""
    n_nodes, node_dim = node_features.shape
    n_edges, edge_dim = edge_features.shape
    f32 = jnp.float32

    # Lane-dense feature padding.
    d_pad = _round_up(node_dim, 128)
    ed_pad = _round_up(edge_dim, 128)

    # Node block: output tile rows (multiple of 8 sublanes).
    if n_blk is None:
        n_blk = min(256, _round_up(n_nodes, 8))
    n_blk = _round_up(n_blk, 8)
    n_pad = _round_up(n_nodes, n_blk)

    # Edge block: reduction tile (multiple of 128 so the (1, e_blk) dst row and
    # one-hot lane dims tile cleanly).
    if e_blk is None:
        e_blk = min(512, _round_up(n_edges, 128))
    e_blk = _round_up(e_blk, 128)
    e_pad = _round_up(n_edges, e_blk)

    # Pad features with zeros; padded edges get index -1 (matches no one-hot
    # column -> dropped, same as the JAX scatter-add reference behavior).
    nf = jnp.zeros((n_pad, d_pad), f32).at[:n_nodes, :node_dim].set(
        node_features.astype(f32))
    ef = jnp.zeros((e_pad, ed_pad), f32).at[:n_edges, :edge_dim].set(
        edge_features.astype(f32))
    src = jnp.full((e_pad, 1), -1, jnp.int32).at[:n_edges, 0].set(
        edge_indices[:, 0].astype(jnp.int32))
    dst = jnp.full((1, e_pad), -1, jnp.int32).at[0, :n_edges].set(
        edge_indices[:, 1].astype(jnp.int32))

    def pad_wT(w, in_pad, out_pad):   # (out, in) -> padded (in_pad, out_pad)
        out_d, in_d = w.shape
        return jnp.zeros((in_pad, out_pad), f32).at[:in_d, :out_d].set(
            w.T.astype(f32))

    def pad_b(b, out_pad):
        return jnp.zeros((1, out_pad), f32).at[0, :b.shape[0]].set(b.astype(f32))

    wn = pad_wT(params["W_node"], d_pad, d_pad)
    we = pad_wT(params["W_edge"], ed_pad, d_pad)
    wo = pad_wT(params["W_out"], d_pad, d_pad)
    bn = pad_b(params["b_node"], d_pad)
    be = pad_b(params["b_edge"], d_pad)
    bo = pad_b(params["b_out"], d_pad)

    grid = (n_pad // n_blk, e_pad // e_blk)
    resident = lambda i, e: (0, 0)   # weights / biases / node features: fetch once

    out = pl.pallas_call(
        crystal_gcn_kernel,
        out_shape=jax.ShapeDtypeStruct((n_pad, d_pad), jnp.float32),
        grid=grid,
        in_specs=[
            pl.BlockSpec((e_blk, 1), lambda i, e: (e, 0)),       # src (column)
            pl.BlockSpec((1, e_blk), lambda i, e: (0, e)),       # dst (row)
            pl.BlockSpec((n_pad, d_pad), resident),              # node features
            pl.BlockSpec((e_blk, ed_pad), lambda i, e: (e, 0)),  # edge features
            pl.BlockSpec((d_pad, d_pad), resident),              # W_node^T
            pl.BlockSpec((1, d_pad), resident),                  # b_node
            pl.BlockSpec((ed_pad, d_pad), resident),             # W_edge^T
            pl.BlockSpec((1, d_pad), resident),                  # b_edge
            pl.BlockSpec((d_pad, d_pad), resident),              # W_out^T
            pl.BlockSpec((1, d_pad), resident),                  # b_out
        ],
        out_specs=pl.BlockSpec((n_blk, d_pad), lambda i, e: (i, 0)),
        scratch_shapes=[
            pltpu.VMEM((n_pad, d_pad), jnp.bfloat16),  # cached node_t
            pltpu.VMEM((n_blk, d_pad), jnp.float32),   # scatter accumulator
        ],
        compiler_params=pltpu.CompilerParams(
            dimension_semantics=("parallel", "arbitrary"),
            vmem_limit_bytes=32 * 1024 * 1024,
        ),
    )(src, dst, nf, ef, wn, bn, we, be, wo, bo)

    return out[:n_nodes, :node_dim]


def _linear_init(key, out_dim, in_dim):
    # deterministic nn.Linear-style init: U(-1/sqrt(in), 1/sqrt(in))
    kw, kb = jax.random.split(key)
    bound = 1.0 / (in_dim ** 0.5)
    w = jax.random.uniform(kw, (out_dim, in_dim), jnp.float32, -bound, bound)
    b = jax.random.uniform(kb, (out_dim,), jnp.float32, -bound, bound)
    return w, b


def _reference(node_features, edge_features, edge_indices, params):
    node_t = node_features @ params["W_node"].T + params["b_node"]
    edge_t = edge_features @ params["W_edge"].T + params["b_edge"]
    src = edge_indices[:, 0]
    dst = edge_indices[:, 1]
    messages = node_t[src] * edge_t
    aggregated = jnp.zeros_like(node_t).at[dst].add(messages)
    return aggregated @ params["W_out"].T + params["b_out"]


if __name__ == "__main__":
    # Small but multi-tile: 2 node blocks (parallel axis) x 3 edge blocks
    # (reduction axis) so the accumulator / pipelining paths are exercised.
    n_nodes, n_edges = 24, 300
    node_dim, edge_dim = 32, 16

    key = jax.random.PRNGKey(0)
    k_node, k_edge, k_idx, k_ln, k_le, k_lo = jax.random.split(key, 6)

    node_features = jax.random.normal(k_node, (n_nodes, node_dim), jnp.float32)
    edge_features = jax.random.normal(k_edge, (n_edges, edge_dim), jnp.float32)
    edge_indices = jax.random.randint(k_idx, (n_edges, 2), 0, n_nodes, jnp.int32)

    W_node, b_node = _linear_init(k_ln, node_dim, node_dim)
    W_edge, b_edge = _linear_init(k_le, node_dim, edge_dim)
    W_out, b_out = _linear_init(k_lo, node_dim, node_dim)
    params = dict(W_node=W_node, b_node=b_node,
                  W_edge=W_edge, b_edge=b_edge,
                  W_out=W_out, b_out=b_out)

    out = crystal_gcn_forward(node_features, edge_features, edge_indices, params,
                              n_blk=16, e_blk=128)
    out = jax.block_until_ready(out)

    ref = _reference(node_features, edge_features, edge_indices, params)
    assert out.shape == (n_nodes, node_dim)
    # Tolerance loosened vs pure-f32 because node_t / messages go through bf16
    # for the MXU gather/scatter matmuls (one-hots themselves are exact).
    assert jnp.allclose(out, ref, atol=5e-2, rtol=5e-2)

    print("KERNEL_OK")
</pallas_src>

<mosaic_0001>
module attributes {stable_mosaic.version = 11 : i64} {
  func.func @crystal_gcn_kernel(%arg0: i32, %arg1: i32, %arg2: memref<128x1xi32, #tpu.memory_space<vmem>>, %arg3: memref<1x128xi32, #tpu.memory_space<vmem>>, %arg4: memref<32x128xf32, #tpu.memory_space<vmem>>, %arg5: memref<128x128xf32, #tpu.memory_space<vmem>>, %arg6: memref<128x128xf32, #tpu.memory_space<vmem>>, %arg7: memref<1x128xf32, #tpu.memory_space<vmem>>, %arg8: memref<128x128xf32, #tpu.memory_space<vmem>>, %arg9: memref<1x128xf32, #tpu.memory_space<vmem>>, %arg10: memref<128x128xf32, #tpu.memory_space<vmem>>, %arg11: memref<1x128xf32, #tpu.memory_space<vmem>>, %arg12: memref<16x128xf32, #tpu.memory_space<vmem>>, %arg13: memref<32x128xbf16, #tpu.memory_space<vmem>>, %arg14: memref<16x128xf32, #tpu.memory_space<vmem>>) attributes {dimension_semantics = [#tpu.dimension_semantics<parallel>, #tpu.dimension_semantics<arbitrary>], iteration_bounds = array<i64: 2, 3>, scalar_prefetch = 0 : i64, scratch_operands = 2 : i64, tpu.core_type = #tpu.core_type<tc>, window_params = [{transform_indices = @transform_0, window_bounds = array<i64: 128, 1>}, {transform_indices = @transform_1, window_bounds = array<i64: 1, 128>}, {pipeline_mode = #tpu.pipeline_mode<synchronous>, transform_indices = @transform_2, window_bounds = array<i64: 32, 128>}, {transform_indices = @transform_3, window_bounds = array<i64: 128, 128>}, {pipeline_mode = #tpu.pipeline_mode<synchronous>, transform_indices = @transform_4, window_bounds = array<i64: 128, 128>}, {pipeline_mode = #tpu.pipeline_mode<synchronous>, transform_indices = @transform_5, window_bounds = array<i64: 1, 128>}, {pipeline_mode = #tpu.pipeline_mode<synchronous>, transform_indices = @transform_6, window_bounds = array<i64: 128, 128>}, {pipeline_mode = #tpu.pipeline_mode<synchronous>, transform_indices = @transform_7, window_bounds = array<i64: 1, 128>}, {pipeline_mode = #tpu.pipeline_mode<synchronous>, transform_indices = @transform_8, window_bounds = array<i64: 128, 128>}, {pipeline_mode = #tpu.pipeline_mode<synchronous>, transform_indices = @transform_9, window_bounds = array<i64: 1, 128>}, {transform_indices = @transform_10, window_bounds = array<i64: 16, 128>}]} {
    %c0_i32 = arith.constant 0 : i32
    %0 = arith.cmpi eq, %arg1, %c0_i32 : i32
    %1 = arith.extui %0 : i1 to i32
    %c0_i32_0 = arith.constant 0 : i32
    %2 = arith.cmpi ne, %1, %c0_i32_0 : i32
    scf.if %2 {
      %c0_19 = arith.constant 0 : index
      %c0_20 = arith.constant 0 : index
      %37 = vector.load %arg4[%c0_19, %c0_20] : memref<32x128xf32, #tpu.memory_space<vmem>>, vector<32x128xf32>
      %c0_21 = arith.constant 0 : index
      %c0_22 = arith.constant 0 : index
      %38 = vector.load %arg6[%c0_21, %c0_22] : memref<128x128xf32, #tpu.memory_space<vmem>>, vector<128x128xf32>
      %cst_23 = arith.constant dense<0.000000e+00> : vector<32x128xf32>
      %39 = tpu.matmul %37, %38, %cst_23 {dimension_numbers = #tpu.dot_dimension_numbers<[1], [0], [0], [1], [0, 0, 1, 1], [], []>} : vector<32x128xf32>, vector<128x128xf32>, vector<32x128xf32> -> vector<32x128xf32>
      %c0_24 = arith.constant 0 : index
      %c0_25 = arith.constant 0 : index
      %40 = vector.load %arg7[%c0_24, %c0_25] : memref<1x128xf32, #tpu.memory_space<vmem>>, vector<1x128xf32>
      %41 = vector.broadcast %40 : vector<1x128xf32> to vector<32x128xf32>
      %42 = arith.addf %39, %41 : vector<32x128xf32>
      %43 = arith.truncf %42 : vector<32x128xf32> to vector<32x128xbf16>
      %c0_26 = arith.constant 0 : index
      %c0_27 = arith.constant 0 : index
      %44 = vector.load %arg13[%c0_26, %c0_27] : memref<32x128xbf16, #tpu.memory_space<vmem>>, vector<32x128xbf16>
      tpu.vector_store %arg13[%c0_26, %c0_27], %43 {strides = array<i32>} : memref<32x128xbf16, #tpu.memory_space<vmem>>, vector<32x128xbf16>,
      %cst_28 = arith.constant 0.000000e+00 : f32
      %45 = vector.broadcast %cst_28 : f32 to vector<16x128xf32>
      %c0_29 = arith.constant 0 : index
      %c0_30 = arith.constant 0 : index
      %46 = vector.load %arg14[%c0_29, %c0_30] : memref<16x128xf32, #tpu.memory_space<vmem>>, vector<16x128xf32>
      tpu.vector_store %arg14[%c0_29, %c0_30], %45 {strides = array<i32>} : memref<16x128xf32, #tpu.memory_space<vmem>>, vector<16x128xf32>,
    } else {
    }
    %c0 = arith.constant 0 : index
    %c0_1 = arith.constant 0 : index
    %3 = vector.load %arg5[%c0, %c0_1] : memref<128x128xf32, #tpu.memory_space<vmem>>, vector<128x128xf32>
    %c0_2 = arith.constant 0 : index
    %c0_3 = arith.constant 0 : index
    %4 = vector.load %arg8[%c0_2, %c0_3] : memref<128x128xf32, #tpu.memory_space<vmem>>, vector<128x128xf32>
    %cst = arith.constant dense<0.000000e+00> : vector<128x128xf32>
    %5 = tpu.matmul %3, %4, %cst {dimension_numbers = #tpu.dot_dimension_numbers<[1], [0], [0], [1], [0, 0, 1, 1], [], []>} : vector<128x128xf32>, vector<128x128xf32>, vector<128x128xf32> -> vector<128x128xf32>
    %c0_4 = arith.constant 0 : index
    %c0_5 = arith.constant 0 : index
    %6 = vector.load %arg9[%c0_4, %c0_5] : memref<1x128xf32, #tpu.memory_space<vmem>>, vector<1x128xf32>
    %7 = vector.broadcast %6 : vector<1x128xf32> to vector<128x128xf32>
    %8 = arith.addf %5, %7 : vector<128x128xf32>
    %c0_6 = arith.constant 0 : index
    %c0_7 = arith.constant 0 : index
    %9 = vector.load %arg2[%c0_6, %c0_7] : memref<128x1xi32, #tpu.memory_space<vmem>>, vector<128x1xi32>
    %10 = tpu.iota {dimensions = array<i32: 1>} : vector<128x32xi32>
    %11 = vector.broadcast %9 : vector<128x1xi32> to vector<128x32xi32>
    %12 = arith.cmpi eq, %11, %10 : vector<128x32xi32>
    %13 = arith.extui %12 : vector<128x32xi1> to vector<128x32xi32>
    %14 = arith.sitofp %13 : vector<128x32xi32> to vector<128x32xf32>
    %15 = arith.truncf %14 : vector<128x32xf32> to vector<128x32xbf16>
    %c0_8 = arith.constant 0 : index
    %c0_9 = arith.constant 0 : index
    %16 = vector.load %arg13[%c0_8, %c0_9] : memref<32x128xbf16, #tpu.memory_space<vmem>>, vector<32x128xbf16>
    %cst_10 = arith.constant dense<0.000000e+00> : vector<128x128xf32>
    %17 = tpu.matmul %15, %16, %cst_10 {dimension_numbers = #tpu.dot_dimension_numbers<[1], [0], [0], [1], [0, 0, 1, 1], [], []>} : vector<128x32xbf16>, vector<32x128xbf16>, vector<128x128xf32> -> vector<128x128xf32>
    %18 = arith.mulf %17, %8 : vector<128x128xf32>
    %19 = arith.truncf %18 : vector<128x128xf32> to vector<128x128xbf16>
    %c16_i32 = arith.constant 16 : i32
    %20 = arith.muli %arg0, %c16_i32 : i32
    %c0_11 = arith.constant 0 : index
    %c0_12 = arith.constant 0 : index
    %21 = vector.load %arg3[%c0_11, %c0_12] : memref<1x128xi32, #tpu.memory_space<vmem>>, vector<1x128xi32>
    %22 = tpu.iota {dimensions = array<i32: 0>} : vector<16x128xi32>
    %23 = vector.broadcast %20 : i32 to vector<16x128xi32>
    %24 = arith.addi %22, %23 : vector<16x128xi32>
    %25 = vector.broadcast %21 : vector<1x128xi32> to vector<16x128xi32>
    %26 = arith.cmpi eq, %25, %24 : vector<16x128xi32>
    %27 = arith.extui %26 : vector<16x128xi1> to vector<16x128xi32>
    %28 = arith.sitofp %27 : vector<16x128xi32> to vector<16x128xf32>
    %29 = arith.truncf %28 : vector<16x128xf32> to vector<16x128xbf16>
    %c0_13 = arith.constant 0 : index
    %c0_14 = arith.constant 0 : index
    %30 = vector.load %arg14[%c0_13, %c0_14] : memref<16x128xf32, #tpu.memory_space<vmem>>, vector<16x128xf32>
    %cst_15 = arith.constant dense<0.000000e+00> : vector<16x128xf32>
    %31 = tpu.matmul %29, %19, %cst_15 {dimension_numbers = #tpu.dot_dimension_numbers<[1], [0], [0], [1], [0, 0, 1, 1], [], []>} : vector<16x128xbf16>, vector<128x128xbf16>, vector<16x128xf32> -> vector<16x128xf32>
    %32 = arith.addf %30, %31 : vector<16x128xf32>
    %c0_16 = arith.constant 0 : index
    %c0_17 = arith.constant 0 : index
    %33 = vector.load %arg14[%c0_16, %c0_17] : memref<16x128xf32, #tpu.memory_space<vmem>>, vector<16x128xf32>
    tpu.vector_store %arg14[%c0_16, %c0_17], %32 {strides = array<i32>} : memref<16x128xf32, #tpu.memory_space<vmem>>, vector<16x128xf32>,
    %c2_i32 = arith.constant 2 : i32
    %34 = arith.cmpi eq, %arg1, %c2_i32 : i32
    %35 = arith.extui %34 : i1 to i32
    %c0_i32_18 = arith.constant 0 : i32
    %36 = arith.cmpi ne, %35, %c0_i32_18 : i32
    scf.if %36 {
      %c0_19 = arith.constant 0 : index
      %c0_20 = arith.constant 0 : index
      %37 = vector.load %arg14[%c0_19, %c0_20] : memref<16x128xf32, #tpu.memory_space<vmem>>, vector<16x128xf32>
      %c0_21 = arith.constant 0 : index
      %c0_22 = arith.constant 0 : index
      %38 = vector.load %arg10[%c0_21, %c0_22] : memref<128x128xf32, #tpu.memory_space<vmem>>, vector<128x128xf32>
      %cst_23 = arith.constant dense<0.000000e+00> : vector<16x128xf32>
      %39 = tpu.matmul %37, %38, %cst_23 {dimension_numbers = #tpu.dot_dimension_numbers<[1], [0], [0], [1], [0, 0, 1, 1], [], []>} : vector<16x128xf32>, vector<128x128xf32>, vector<16x128xf32> -> vector<16x128xf32>
      %c0_24 = arith.constant 0 : index
      %c0_25 = arith.constant 0 : index
      %40 = vector.load %arg11[%c0_24, %c0_25] : memref<1x128xf32, #tpu.memory_space<vmem>>, vector<1x128xf32>
      %41 = vector.broadcast %40 : vector<1x128xf32> to vector<16x128xf32>
      %42 = arith.addf %39, %41 : vector<16x128xf32>
      %c0_26 = arith.constant 0 : index
      %c0_27 = arith.constant 0 : index
      %43 = vector.load %arg12[%c0_26, %c0_27] : memref<16x128xf32, #tpu.memory_space<vmem>>, vector<16x128xf32>
      tpu.vector_store %arg12[%c0_26, %c0_27], %42 {strides = array<i32>} : memref<16x128xf32, #tpu.memory_space<vmem>>, vector<16x128xf32>,
    } else {
    }
    return
  }
  func.func @transform_0(%arg0: i32, %arg1: i32) -> (i32, i32) {
    %c0_i32 = arith.constant 0 : i32
    %c0_i32_0 = arith.constant 0 : i32
    return %arg1, %c0_i32 : i32, i32
  }
  func.func @transform_1(%arg0: i32, %arg1: i32) -> (i32, i32) {
    %c0_i32 = arith.constant 0 : i32
    %c0_i32_0 = arith.constant 0 : i32
    return %c0_i32, %arg1 : i32, i32
  }
  func.func @transform_2(%arg0: i32, %arg1: i32) -> (i32, i32) {
    %c0_i32 = arith.constant 0 : i32
    %c0_i32_0 = arith.constant 0 : i32
    %c0_i32_1 = arith.constant 0 : i32
    return %c0_i32, %c0_i32_0 : i32, i32
  }
  func.func @transform_3(%arg0: i32, %arg1: i32) -> (i32, i32) {
    %c0_i32 = arith.constant 0 : i32
    %c0_i32_0 = arith.constant 0 : i32
    return %arg1, %c0_i32 : i32, i32
  }
  func.func @transform_4(%arg0: i32, %arg1: i32) -> (i32, i32) {
    %c0_i32 = arith.constant 0 : i32
    %c0_i32_0 = arith.constant 0 : i32
    %c0_i32_1 = arith.constant 0 : i32
    return %c0_i32, %c0_i32_0 : i32, i32
  }
  func.func @transform_5(%arg0: i32, %arg1: i32) -> (i32, i32) {
    %c0_i32 = arith.constant 0 : i32
    %c0_i32_0 = arith.constant 0 : i32
    %c0_i32_1 = arith.constant 0 : i32
    return %c0_i32, %c0_i32_0 : i32, i32
  }
  func.func @transform_6(%arg0: i32, %arg1: i32) -> (i32, i32) {
    %c0_i32 = arith.constant 0 : i32
    %c0_i32_0 = arith.constant 0 : i32
    %c0_i32_1 = arith.constant 0 : i32
    return %c0_i32, %c0_i32_0 : i32, i32
  }
  func.func @transform_7(%arg0: i32, %arg1: i32) -> (i32, i32) {
    %c0_i32 = arith.constant 0 : i32
    %c0_i32_0 = arith.constant 0 : i32
    %c0_i32_1 = arith.constant 0 : i32
    return %c0_i32, %c0_i32_0 : i32, i32
  }
  func.func @transform_8(%arg0: i32, %arg1: i32) -> (i32, i32) {
    %c0_i32 = arith.constant 0 : i32
    %c0_i32_0 = arith.constant 0 : i32
    %c0_i32_1 = arith.constant 0 : i32
    return %c0_i32, %c0_i32_0 : i32, i32
  }
  func.func @transform_9(%arg0: i32, %arg1: i32) -> (i32, i32) {
    %c0_i32 = arith.constant 0 : i32
    %c0_i32_0 = arith.constant 0 : i32
    %c0_i32_1 = arith.constant 0 : i32
    return %c0_i32, %c0_i32_0 : i32, i32
  }
  func.func @transform_10(%arg0: i32, %arg1: i32) -> (i32, i32) {
    %c0_i32 = arith.constant 0 : i32
    %c0_i32_0 = arith.constant 0 : i32
    return %arg0, %c0_i32 : i32, i32
  }
}

</mosaic_0001>

<llo_original>
// kernel: crystal_gcn_forward.1
$region0: #{crystal_gcn_forward.1}
  #allocation0 [shape = 'u32[]', space=smem, size = 0x4, offset = 0x4, fixed_abs, tag = 'smem constant byte address 0x4 - core index']
  #allocation1 [shape = 'u32[144,128]{1,0:T(1,128)}', space=vmem, size = 0x12000, scoped, tag = 'internal scratch']
  #allocation2 [shape = 'bf16[32,128]{1,0:T(8,128)(2,1)}', space=vmem, size = 0x2000, scoped, tag = 'scratch operand']
  #allocation3 [shape = 'f32[16,128]{1,0:T(8,128)}', space=vmem, size = 0x2000, scoped, tag = 'scratch operand']
  %s0 = inlined_call_operand.vmem [shape: s32[384,1], index: 0, kind: input, shape index: {}]
  %s1 = inlined_call_operand.vmem [shape: s32[1,384], index: 1, kind: input, shape index: {}]
  %s2 = inlined_call_operand.vmem [shape: f32[32,128], index: 2, kind: input, shape index: {}]
  %s3 = inlined_call_operand.vmem [shape: f32[384,128], index: 3, kind: input, shape index: {}]
  %s4 = inlined_call_operand.vmem [shape: f32[128,128], index: 4, kind: input, shape index: {}]
  %s5 = inlined_call_operand.vmem [shape: f32[1,128], index: 5, kind: input, shape index: {}]
  %s6 = inlined_call_operand.vmem [shape: f32[128,128], index: 6, kind: input, shape index: {}]
  %s7 = inlined_call_operand.vmem [shape: f32[1,128], index: 7, kind: input, shape index: {}]
  %s8 = inlined_call_operand.vmem [shape: f32[128,128], index: 8, kind: input, shape index: {}]
  %s9 = inlined_call_operand.vmem [shape: f32[1,128], index: 9, kind: input, shape index: {}]
  %s10 = inlined_call_operand.vmem [shape: f32[32,128], index: 10, kind: output, shape index: {}]
  %s11 = sld [smem:[#allocation0]]
  $region81: #{crystal_gcn_forward.1} parent=0
    _
  %s13 = ssub.s32 1, %s11
  %s14 = scalar_select 0, %s13, %s11
  loop: start=0, step=1, limit=8
  $region2: #{crystal_gcn_forward.1} parent=0 // loop_pre_header
    _
  $region3: #{crystal_gcn_forward.1} parent=0 // loop_header
    %s16 = sphi 0, %s20
    %p17 = scmp.ge.s32.totalorder %s16, 8
    %s23 = sphi 0, %s35
    %s24 = sphi 0, %s31
    %s25 = sphi 0, %s23
    %s26 = sphi 0, %s24
    %s27 = sphi 0, %s25
    %s28 = sphi 0, %s26
    %s38 = sphi 0, %s40
    %s41 = sphi 0, %s38
    %s42 = sphi 0, %s41
    %s58 = sphi 0, %s42
    %s64 = sphi 0, %s66
    %s67 = sphi 0, %s64
    %s68 = sphi 0, %s67
    %s84 = sphi 0, %s68
    %s88 = sphi 0, %s88
    %s90 = sphi 0, %s88
    %s91 = sphi 0, %s90
    %s105 = sphi 0, %s91
    %s111 = sphi 0, %s113
    %s114 = sphi 0, %s111
    %s115 = sphi 0, %s114
    %s131 = sphi 0, %s115
    %s135 = sphi 0, %s135
    %s137 = sphi 0, %s135
    %s138 = sphi 0, %s137
    %s152 = sphi 0, %s138
    %s156 = sphi 0, %s156
    %s158 = sphi 0, %s156
    %s159 = sphi 0, %s158
    %s173 = sphi 0, %s159
    %s177 = sphi 0, %s177
    %s179 = sphi 0, %s177
    %s180 = sphi 0, %s179
    %s194 = sphi 0, %s180
    %s198 = sphi 0, %s198
    %s200 = sphi 0, %s198
    %s201 = sphi 0, %s200
    %s215 = sphi 0, %s201
    %s219 = sphi 0, %s219
    %s221 = sphi 0, %s219
    %s222 = sphi 0, %s221
    %s236 = sphi 0, %s222
    %s240 = sphi 0, %s240
    %s242 = sphi 0, %s240
    %s243 = sphi 0, %s242
    %s257 = sphi 0, %s243
    %s263 = sphi 0, %s265
    %s266 = sphi 0, %s263
    %s267 = sphi 0, %s266
    %s283 = sphi 0, %s267
  $region4: #{crystal_gcn_forward.1} parent=0 // loop_header_branch
    %19 = sbr.rel (%p17) target = $region8
  $region5: #{crystal_gcn_forward.1} parent=0 // loop_body
    %s21 = ssub.s32 %s16, 1
    %s22 = ssub.s32 %s16, 2
    %s29 = sadd.s32 1, %s24
    %p30 = scmp.ge.s32.totalorder %s29, 3
    %s31 = scalar_select %p30, 0, %s29
    %s32 = sadd.s32 1, %s23
    %s33 = scalar_select %p30, %s32, %s23
    %p34 = scmp.ge.s32.totalorder %s33, 2
    %s35 = scalar_select %p34, 0, %s33
    %s36 = ssub.s32 %s24, %s31
    %p37 = scmp.eq.s32.totalorder %s36, 0
    %s39 = sadd.s32 %s38, 1
    %s40 = scalar_select %p37, %s38, %s39
    %p43 = pneg %p37
    %p44 = scmp.eq.s32.totalorder %s16, 5
    %p45 = por %p43, %p44
    %p46 = scmp.ne.s32.totalorder %s38, %s41
    %p47 = scmp.eq.s32.totalorder %s16, 0
    %p48 = por %p46, %p47
    %p49 = scmp.ne.s32.totalorder %s38, %s41
    %p50 = scmp.eq.s32.totalorder %s21, 5
    %p51 = por %p49, %p50
    %p52 = scmp.ne.s32.totalorder %s41, %s42
    %p53 = scmp.eq.s32.totalorder %s21, 0
    %p54 = por %p52, %p53
    %p55 = scmp.ne.s32.totalorder %s41, %s42
    %p56 = scmp.eq.s32.totalorder %s22, 5
    %p57 = por %p55, %p56
    %p59 = scmp.ne.s32.totalorder %s42, %s58
    %p60 = scmp.eq.s32.totalorder %s22, 0
    %p61 = por %p59, %p60
    %s62 = ssub.s32 %s24, %s31
    %p63 = scmp.eq.s32.totalorder %s62, 0
    %s65 = sadd.s32 %s64, 1
    %s66 = scalar_select %p63, %s64, %s65
    %p69 = pneg %p63
    %p70 = scmp.eq.s32.totalorder %s16, 5
    %p71 = por %p69, %p70
    %p72 = scmp.ne.s32.totalorder %s64, %s67
    %p73 = scmp.eq.s32.totalorder %s16, 0
    %p74 = por %p72, %p73
    %p75 = scmp.ne.s32.totalorder %s64, %s67
    %p76 = scmp.eq.s32.totalorder %s21, 5
    %p77 = por %p75, %p76
    %p78 = scmp.ne.s32.totalorder %s67, %s68
    %p79 = scmp.eq.s32.totalorder %s21, 0
    %p80 = por %p78, %p79
    %p81 = scmp.ne.s32.totalorder %s67, %s68
    %p82 = scmp.eq.s32.totalorder %s22, 5
    %p83 = por %p81, %p82
    %p85 = scmp.ne.s32.totalorder %s68, %s84
    %p86 = scmp.eq.s32.totalorder %s22, 0
    %p87 = por %p85, %p86
    %s89 = sadd.s32 %s88, 1
    %p92 = scmp.eq.s32.totalorder %s16, 5
    %p93 = scmp.ne.s32.totalorder %s88, %s90
    %p94 = scmp.eq.s32.totalorder %s16, 0
    %p95 = por %p93, %p94
    %p96 = scmp.ne.s32.totalorder %s88, %s90
    %p97 = scmp.eq.s32.totalorder %s21, 5
    %p98 = por %p96, %p97
    %p99 = scmp.ne.s32.totalorder %s90, %s91
    %p100 = scmp.eq.s32.totalorder %s21, 0
    %p101 = por %p99, %p100
    %p102 = scmp.ne.s32.totalorder %s90, %s91
    %p103 = scmp.eq.s32.totalorder %s22, 5
    %p104 = por %p102, %p103
    %p106 = scmp.ne.s32.totalorder %s91, %s105
    %p107 = scmp.eq.s32.totalorder %s22, 0
    %p108 = por %p106, %p107
    %s109 = ssub.s32 %s24, %s31
    %p110 = scmp.eq.s32.totalorder %s109, 0
    %s112 = sadd.s32 %s111, 1
    %s113 = scalar_select %p110, %s111, %s112
    %p116 = pneg %p110
    %p117 = scmp.eq.s32.totalorder %s16, 5
    %p118 = por %p116, %p117
    %p119 = scmp.ne.s32.totalorder %s111, %s114
    %p120 = scmp.eq.s32.totalorder %s16, 0
    %p121 = por %p119, %p120
    %p122 = scmp.ne.s32.totalorder %s111, %s114
    %p123 = scmp.eq.s32.totalorder %s21, 5
    %p124 = por %p122, %p123
    %p125 = scmp.ne.s32.totalorder %s114, %s115
    %p126 = scmp.eq.s32.totalorder %s21, 0
    %p127 = por %p125, %p126
    %p128 = scmp.ne.s32.totalorder %s114, %s115
    %p129 = scmp.eq.s32.totalorder %s22, 5
    %p130 = por %p128, %p129
    %p132 = scmp.ne.s32.totalorder %s115, %s131
    %p133 = scmp.eq.s32.totalorder %s22, 0
    %p134 = por %p132, %p133
    %s136 = sadd.s32 %s135, 1
    %p139 = scmp.eq.s32.totalorder %s16, 5
    %p140 = scmp.ne.s32.totalorder %s135, %s137
    %p141 = scmp.eq.s32.totalorder %s16, 0
    %p142 = por %p140, %p141
    %p143 = scmp.ne.s32.totalorder %s135, %s137
    %p144 = scmp.eq.s32.totalorder %s21, 5
    %p145 = por %p143, %p144
    %p146 = scmp.ne.s32.totalorder %s137, %s138
    %p147 = scmp.eq.s32.totalorder %s21, 0
    %p148 = por %p146, %p147
    %p149 = scmp.ne.s32.totalorder %s137, %s138
    %p150 = scmp.eq.s32.totalorder %s22, 5
    %p151 = por %p149, %p150
    %p153 = scmp.ne.s32.totalorder %s138, %s152
    %p154 = scmp.eq.s32.totalorder %s22, 0
    %p155 = por %p153, %p154
    %s157 = sadd.s32 %s156, 1
    %p160 = scmp.eq.s32.totalorder %s16, 5
    %p161 = scmp.ne.s32.totalorder %s156, %s158
    %p162 = scmp.eq.s32.totalorder %s16, 0
    %p163 = por %p161, %p162
    %p164 = scmp.ne.s32.totalorder %s156, %s158
    %p165 = scmp.eq.s32.totalorder %s21, 5
    %p166 = por %p164, %p165
    %p167 = scmp.ne.s32.totalorder %s158, %s159
    %p168 = scmp.eq.s32.totalorder %s21, 0
    %p169 = por %p167, %p168
    %p170 = scmp.ne.s32.totalorder %s158, %s159
    %p171 = scmp.eq.s32.totalorder %s22, 5
    %p172 = por %p170, %p171
    %p174 = scmp.ne.s32.totalorder %s159, %s173
    %p175 = scmp.eq.s32.totalorder %s22, 0
    %p176 = por %p174, %p175
    %s178 = sadd.s32 %s177, 1
    %p181 = scmp.eq.s32.totalorder %s16, 5
    %p182 = scmp.ne.s32.totalorder %s177, %s179
    %p183 = scmp.eq.s32.totalorder %s16, 0
    %p184 = por %p182, %p183
    %p185 = scmp.ne.s32.totalorder %s177, %s179
    %p186 = scmp.eq.s32.totalorder %s21, 5
    %p187 = por %p185, %p186
    %p188 = scmp.ne.s32.totalorder %s179, %s180
    %p189 = scmp.eq.s32.totalorder %s21, 0
    %p190 = por %p188, %p189
    %p191 = scmp.ne.s32.totalorder %s179, %s180
    %p192 = scmp.eq.s32.totalorder %s22, 5
    %p193 = por %p191, %p192
    %p195 = scmp.ne.s32.totalorder %s180, %s194
    %p196 = scmp.eq.s32.totalorder %s22, 0
    %p197 = por %p195, %p196
    %s199 = sadd.s32 %s198, 1
    %p202 = scmp.eq.s32.totalorder %s16, 5
    %p203 = scmp.ne.s32.totalorder %s198, %s200
    %p204 = scmp.eq.s32.totalorder %s16, 0
    %p205 = por %p203, %p204
    %p206 = scmp.ne.s32.totalorder %s198, %s200
    %p207 = scmp.eq.s32.totalorder %s21, 5
    %p208 = por %p206, %p207
    %p209 = scmp.ne.s32.totalorder %s200, %s201
    %p210 = scmp.eq.s32.totalorder %s21, 0
    %p211 = por %p209, %p210
    %p212 = scmp.ne.s32.totalorder %s200, %s201
    %p213 = scmp.eq.s32.totalorder %s22, 5
    %p214 = por %p212, %p213
    %p216 = scmp.ne.s32.totalorder %s201, %s215
    %p217 = scmp.eq.s32.totalorder %s22, 0
    %p218 = por %p216, %p217
    %s220 = sadd.s32 %s219, 1
    %p223 = scmp.eq.s32.totalorder %s16, 5
    %p224 = scmp.ne.s32.totalorder %s219, %s221
    %p225 = scmp.eq.s32.totalorder %s16, 0
    %p226 = por %p224, %p225
    %p227 = scmp.ne.s32.totalorder %s219, %s221
    %p228 = scmp.eq.s32.totalorder %s21, 5
    %p229 = por %p227, %p228
    %p230 = scmp.ne.s32.totalorder %s221, %s222
    %p231 = scmp.eq.s32.totalorder %s21, 0
    %p232 = por %p230, %p231
    %p233 = scmp.ne.s32.totalorder %s221, %s222
    %p234 = scmp.eq.s32.totalorder %s22, 5
    %p235 = por %p233, %p234
    %p237 = scmp.ne.s32.totalorder %s222, %s236
    %p238 = scmp.eq.s32.totalorder %s22, 0
    %p239 = por %p237, %p238
    %s241 = sadd.s32 %s240, 1
    %p244 = scmp.eq.s32.totalorder %s16, 5
    %p245 = scmp.ne.s32.totalorder %s240, %s242
    %p246 = scmp.eq.s32.totalorder %s16, 0
    %p247 = por %p245, %p246
    %p248 = scmp.ne.s32.totalorder %s240, %s242
    %p249 = scmp.eq.s32.totalorder %s21, 5
    %p250 = por %p248, %p249
    %p251 = scmp.ne.s32.totalorder %s242, %s243
    %p252 = scmp.eq.s32.totalorder %s21, 0
    %p253 = por %p251, %p252
    %p254 = scmp.ne.s32.totalorder %s242, %s243
    %p255 = scmp.eq.s32.totalorder %s22, 5
    %p256 = por %p254, %p255
    %p258 = scmp.ne.s32.totalorder %s243, %s257
    %p259 = scmp.eq.s32.totalorder %s22, 0
    %p260 = por %p258, %p259
    %s261 = ssub.s32 %s23, %s35
    %p262 = scmp.eq.s32.totalorder %s261, 0
    %s264 = sadd.s32 %s263, 1
    %s265 = scalar_select %p262, %s263, %s264
    %p268 = pneg %p262
    %p269 = scmp.eq.s32.totalorder %s16, 5
    %p270 = por %p268, %p269
    %p271 = scmp.ne.s32.totalorder %s263, %s266
    %p272 = scmp.eq.s32.totalorder %s16, 0
    %p273 = por %p271, %p272
    %p274 = scmp.ne.s32.totalorder %s263, %s266
    %p275 = scmp.eq.s32.totalorder %s21, 5
    %p276 = por %p274, %p275
    %p277 = scmp.ne.s32.totalorder %s266, %s267
    %p278 = scmp.eq.s32.totalorder %s21, 0
    %p279 = por %p277, %p278
    %p280 = scmp.ne.s32.totalorder %s266, %s267
    %p281 = scmp.eq.s32.totalorder %s22, 5
    %p282 = por %p280, %p281
    %p284 = scmp.ne.s32.totalorder %s267, %s283
    %p285 = scmp.eq.s32.totalorder %s22, 0
    %p286 = por %p284, %p285
    %p287 = scmp.le.s32.totalorder 1, %s16
    %p288 = scmp.lt.s32.totalorder %s16, 7
    %p289 = pnand %p287, %p288
    %p290 = pneg %p289
    // Predicated region
    $region9: #{crystal_gcn_forward.1} parent=5 // pred_check
      _
    $region10: #{crystal_gcn_forward.1} parent=5 // pred_check_branch
      %292 = sbr.rel (%p289) target = $region12
    $region11: #{crystal_gcn_forward.1} parent=5 // pred_region
      %s293 = ssub.s32 %s16, 1
      // Predicated region
      $region13: #{crystal_gcn_forward.1} parent=11 // pred_check
        %p294 = pneg %p101
      $region14: #{crystal_gcn_forward.1} parent=11 // pred_check_branch
        %296 = sbr.rel (%p294) target = $region16
      $region15: #{crystal_gcn_forward.1} parent=11 // pred_region
        _
      $region16: #{crystal_gcn_forward.1} parent=11 // pred_fallthru
        _
      // Predicated region
      $region17: #{crystal_gcn_forward.1} parent=11 // pred_check
        %p297 = pneg %p148
      $region18: #{crystal_gcn_forward.1} parent=11 // pred_check_branch
        %299 = sbr.rel (%p297) target = $region20
      $region19: #{crystal_gcn_forward.1} parent=11 // pred_region
        _
      $region20: #{crystal_gcn_forward.1} parent=11 // pred_fallthru
        _
      // Predicated region
      $region21: #{crystal_gcn_forward.1} parent=11 // pred_check
        %p300 = pneg %p169
      $region22: #{crystal_gcn_forward.1} parent=11 // pred_check_branch
        %302 = sbr.rel (%p300) target = $region24
      $region23: #{crystal_gcn_forward.1} parent=11 // pred_region
        _
      $region24: #{crystal_gcn_forward.1} parent=11 // pred_fallthru
        _
      // Predicated region
      $region25: #{crystal_gcn_forward.1} parent=11 // pred_check
        %p303 = pneg %p190
      $region26: #{crystal_gcn_forward.1} parent=11 // pred_check_branch
        %305 = sbr.rel (%p303) target = $region28
      $region27: #{crystal_gcn_forward.1} parent=11 // pred_region
        _
      $region28: #{crystal_gcn_forward.1} parent=11 // pred_fallthru
        _
      // Predicated region
      $region29: #{crystal_gcn_forward.1} parent=11 // pred_check
        %p306 = pneg %p211
      $region30: #{crystal_gcn_forward.1} parent=11 // pred_check_branch
        %308 = sbr.rel (%p306) target = $region32
      $region31: #{crystal_gcn_forward.1} parent=11 // pred_region
        _
      $region32: #{crystal_gcn_forward.1} parent=11 // pred_fallthru
        _
      // Predicated region
      $region33: #{crystal_gcn_forward.1} parent=11 // pred_check
        %p309 = pneg %p232
      $region34: #{crystal_gcn_forward.1} parent=11 // pred_check_branch
        %311 = sbr.rel (%p309) target = $region36
      $region35: #{crystal_gcn_forward.1} parent=11 // pred_region
        _
      $region36: #{crystal_gcn_forward.1} parent=11 // pred_fallthru
        _
      // Predicated region
      $region37: #{crystal_gcn_forward.1} parent=11 // pred_check
        %p312 = pneg %p253
      $region38: #{crystal_gcn_forward.1} parent=11 // pred_check_branch
        %314 = sbr.rel (%p312) target = $region40
      $region39: #{crystal_gcn_forward.1} parent=11 // pred_region
        _
      $region40: #{crystal_gcn_forward.1} parent=11 // pred_fallthru
        _
    $region12: #{crystal_gcn_forward.1} parent=5 // pred_fallthru
      _
    %p315 = scmp.lt.s32.totalorder %s16, 6
    // Predicated region
    $region41: #{crystal_gcn_forward.1} parent=5 // pred_check
      %p316 = pneg %p315
    $region42: #{crystal_gcn_forward.1} parent=5 // pred_check_branch
      %318 = sbr.rel (%p316) target = $region44
    $region43: #{crystal_gcn_forward.1} parent=5 // pred_region
      // Predicated region
      $region45: #{crystal_gcn_forward.1} parent=43 // pred_check
        %p319 = pneg %p48
      $region46: #{crystal_gcn_forward.1} parent=43 // pred_check_branch
        %321 = sbr.rel (%p319) target = $region48
      $region47: #{crystal_gcn_forward.1} parent=43 // pred_region
        %s322 = smul.u32 16, %s24
        %p323 = scmp.lt.s32.totalorder %s322, 47
        %s324 = scalar_select %p323, %s322, 47
        %s325 = smul.addr %s324, 8
        %s326 = scalar_lea.vmem %s0, %s325
        %s327 = smul.u32 16, %s24
      $region48: #{crystal_gcn_forward.1} parent=43 // pred_fallthru
        _
      // Predicated region
      $region49: #{crystal_gcn_forward.1} parent=43 // pred_check
        %p328 = pneg %p74
      $region50: #{crystal_gcn_forward.1} parent=43 // pred_check_branch
        %330 = sbr.rel (%p328) target = $region52
      $region51: #{crystal_gcn_forward.1} parent=43 // pred_region
        %p331 = scmp.lt.s32.totalorder %s24, 2
        %s332 = scalar_select %p331, %s24, 2
        %s333 = scalar_lea.vmem %s1, %s332
      $region52: #{crystal_gcn_forward.1} parent=43 // pred_fallthru
        _
      // Predicated region
      $region53: #{crystal_gcn_forward.1} parent=43 // pred_check
        %p334 = pneg %p121
      $region54: #{crystal_gcn_forward.1} parent=43 // pred_check_branch
        %336 = sbr.rel (%p334) target = $region56
      $region55: #{crystal_gcn_forward.1} parent=43 // pred_region
        %s337 = smul.u32 16, %s24
        %p338 = scmp.lt.s32.totalorder %s337, 47
        %s339 = scalar_select %p338, %s337, 47
        %s340 = smul.addr %s339, 8
        %s341 = scalar_lea.vmem %s3, %s340
        %s342 = smul.u32 16, %s24
      $region56: #{crystal_gcn_forward.1} parent=43 // pred_fallthru
        _
    $region44: #{crystal_gcn_forward.1} parent=5 // pred_fallthru
      _
    %p343 = scmp.le.s32.totalorder 1, %s16
    %p344 = scmp.lt.s32.totalorder %s16, 7
    %p345 = pnand %p343, %p344
    %p346 = pneg %p345
    // Predicated region
    $region57: #{crystal_gcn_forward.1} parent=5 // pred_check
      _
    $region58: #{crystal_gcn_forward.1} parent=5 // pred_check_branch
      %348 = sbr.rel (%p345) target = $region60
    $region59: #{crystal_gcn_forward.1} parent=5 // pred_region
      %s349 = ssub.s32 %s16, 1
      %s350 = smul.u32 16, %s26
      %p351 = scmp.lt.s32.totalorder %s350, 47
      %s352 = scalar_select %p351, %s350, 47
      %s353 = smul.addr %s352, 8
      %s354 = scalar_lea.vmem %s0, %s353
      %p355 = pneg %p54
      %p356 = pneg %p51
      %p357 = scmp.lt.s32.totalorder %s26, 2
      %s358 = scalar_select %p357, %s26, 2
      %s359 = scalar_lea.vmem %s1, %s358
      %p360 = pneg %p80
      %p361 = pneg %p77
      %p362 = pneg %p101
      %p363 = pneg %p98
      %s364 = smul.u32 16, %s26
      %p365 = scmp.lt.s32.totalorder %s364, 47
      %s366 = scalar_select %p365, %s364, 47
      %s367 = smul.addr %s366, 8
      %s368 = scalar_lea.vmem %s3, %s367
      %p369 = pneg %p127
      %p370 = pneg %p124
      %p371 = pneg %p148
      %p372 = pneg %p145
      %p373 = pneg %p169
      %p374 = pneg %p166
      %p375 = pneg %p190
      %p376 = pneg %p187
      %p377 = pneg %p211
      %p378 = pneg %p208
      %p379 = pneg %p232
      %p380 = pneg %p229
      %p381 = pneg %p253
      %p382 = pneg %p250
      %p383 = pneg %p279
      %p384 = pneg %p276
      %s385 = smul.u32 2, %s25
      %p386 = scmp.lt.s32.totalorder %s385, 3
      %s387 = scalar_select %p386, %s385, 3
      %s388 = smul.addr %s387, 8
      %s389 = scalar_lea.vmem %s10, %s388
      %s390 = smul.u32 16, %s26
      %p391 = scmp.lt.s32.totalorder %s390, 47
      %s392 = scalar_select %p391, %s390, 47
      %s393 = smul.addr %s392, 8
      %s394 = scalar_lea.vmem %s0, %s393
      %s395 = smul.u32 16, %s26
      %p396 = scmp.lt.s32.totalorder %s26, 2
      %s397 = scalar_select %p396, %s26, 2
      %s398 = scalar_lea.vmem %s1, %s397
      %s399 = smul.u32 16, %s26
      %p400 = scmp.lt.s32.totalorder %s399, 47
      %s401 = scalar_select %p400, %s399, 47
      %s402 = smul.addr %s401, 8
      %s403 = scalar_lea.vmem %s3, %s402
      %s404 = smul.u32 16, %s26
      %s405 = smul.u32 2, %s25
      %p406 = scmp.lt.s32.totalorder %s405, 3
      %s407 = scalar_select %p406, %s405, 3
      %s408 = smul.addr %s407, 8
      %s409 = scalar_lea.vmem %s10, %s408
      %s410 = smul.u32 2, %s25
      %p412 = scmp.eq.s32.totalorder %s26, 0
      // Predicated region
      $region61: #{crystal_gcn_forward.1} parent=59 // pred_check
        %p413 = pneg %p412
      $region62: #{crystal_gcn_forward.1} parent=59 // pred_check_branch
        %415 = sbr.rel (%p413) target = $region64
      $region63: #{crystal_gcn_forward.1} parent=59 // pred_region
        %v416 = vld [vmem:[%s2] sm:$0xff]
        %v417 = vld [vmem:[%s2 + $0x8] sm:$0xff]
        %v418 = vld [vmem:[%s2 + $0x10] sm:$0xff]
        %v419 = vld [vmem:[%s2 + $0x18] sm:$0xff]
        %v420 = vld [vmem:[%s4] sm:$0xff]
        %v421 = vld [vmem:[%s4 + $0x8] sm:$0xff]
        %v422 = vld [vmem:[%s4 + $0x10] sm:$0xff]
        %v423 = vld [vmem:[%s4 + $0x18] sm:$0xff]
        %v424 = vld [vmem:[%s4 + $0x20] sm:$0xff]
        %v425 = vld [vmem:[%s4 + $0x28] sm:$0xff]
        %v426 = vld [vmem:[%s4 + $0x30] sm:$0xff]
        %v427 = vld [vmem:[%s4 + $0x38] sm:$0xff]
        %v428 = vld [vmem:[%s4 + $0x40] sm:$0xff]
        %v429 = vld [vmem:[%s4 + $0x48] sm:$0xff]
        %v430 = vld [vmem:[%s4 + $0x50] sm:$0xff]
        %v431 = vld [vmem:[%s4 + $0x58] sm:$0xff]
        %v432 = vld [vmem:[%s4 + $0x60] sm:$0xff]
        %v433 = vld [vmem:[%s4 + $0x68] sm:$0xff]
        %v434 = vld [vmem:[%s4 + $0x70] sm:$0xff]
        %v435 = vld [vmem:[%s4 + $0x78] sm:$0xff]
        %v436 = vld [vmem:[%s5] sm:$0x1]
        %v438 = vlaneseq
        %v439 = vshrl.u32 %v438, 7
        %v440 = vsub.s32 0, %v439
        %v441 = vrot.slane %v436, %v440
        %443 = vmatprep.subr.mxu0 0.0
        %444 = vmatpush1.msra.mxu0 %v435
        %445 = vmatprep.subr.mxu0 0.0
        %446 = vmatpush1.msra.mxu0 %v434
        %447 = vmatprep.subr.mxu0 0.0
        %448 = vmatpush1.msra.mxu0 %v433
        %449 = vmatprep.subr.mxu0 0.0
        %450 = vmatpush1.msra.mxu0 %v432
        %451 = vmatprep.subr.mxu0 0.0
        %452 = vmatpush1.msra.mxu0 %v431
        %453 = vmatprep.subr.mxu0 0.0
        %454 = vmatpush1.msra.mxu0 %v430
        %455 = vmatprep.subr.mxu0 0.0
        %456 = vmatpush1.msra.mxu0 %v429
        %457 = vmatprep.subr.mxu0 0.0
        %458 = vmatpush1.msra.mxu0 %v428
        %459 = vmatprep.subr.mxu0 0.0
        %460 = vmatpush1.msra.mxu0 %v427
        %461 = vmatprep.subr.mxu0 0.0
        %462 = vmatpush1.msra.mxu0 %v426
        %463 = vmatprep.subr.mxu0 0.0
        %464 = vmatpush1.msra.mxu0 %v425
        %465 = vmatprep.subr.mxu0 0.0
        %466 = vmatpush1.msra.mxu0 %v424
        %467 = vmatprep.subr.mxu0 0.0
        %468 = vmatpush1.msra.mxu0 %v423
        %469 = vmatprep.subr.mxu0 0.0
        %470 = vmatpush1.msra.mxu0 %v422
        %471 = vmatprep.subr.mxu0 0.0
        %472 = vmatpush1.msra.mxu0 %v421
        %473 = vmatprep.subr.mxu0 0.0
        %474 = vmatpush1.msra.mxu0 %v420
        %475 = vmatprep.subr.mxu0 0.0
        %476 = vmatpush2.msra.mxu0 0.0
        %477 = vmatprep.subr.mxu0 0.0
        %478 = vmatpush2.msra.mxu0 0.0
        %479 = vmatprep.subr.mxu0 0.0
        %480 = vmatpush2.msra.mxu0 0.0
        %481 = vmatprep.subr.mxu0 0.0
        %482 = vmatpush2.msra.mxu0 0.0
        %483 = vmatprep.subr.mxu0 0.0
        %484 = vmatpush2.msra.mxu0 0.0
        %485 = vmatprep.subr.mxu0 0.0
        %486 = vmatpush2.msra.mxu0 0.0
        %487 = vmatprep.subr.mxu0 0.0
        %488 = vmatpush2.msra.mxu0 0.0
        %489 = vmatprep.subr.mxu0 0.0
        %490 = vmatpush2.msra.mxu0 0.0
        %491 = vmatprep.subr.mxu0 0.0
        %492 = vmatpush2.msra.mxu0 0.0
        %493 = vmatprep.subr.mxu0 0.0
        %494 = vmatpush2.msra.mxu0 0.0
        %495 = vmatprep.subr.mxu0 0.0
        %496 = vmatpush2.msra.mxu0 0.0
        %497 = vmatprep.subr.mxu0 0.0
        %498 = vmatpush2.msra.mxu0 0.0
        %499 = vmatprep.subr.mxu0 0.0
        %500 = vmatpush2.msra.mxu0 0.0
        %501 = vmatprep.subr.mxu0 0.0
        %502 = vmatpush2.msra.mxu0 0.0
        %503 = vmatprep.subr.mxu0 0.0
        %504 = vmatpush2.msra.mxu0 0.0
        %505 = vmatprep.subr.mxu0 0.0
        %506 = vmatpush2.msra.mxu0 0.0
        %507 = vmatprep.mubr.f32.mxu0 0.0
        %508 = vmatmul.mubr.f32.gmra.mxu0 %v416
        %v509 = vpop.f32.mrf.mxu0
        %v510 = vadd.f32 %v441, %v509
        %v511 = vpop.f32.mrf.mxu0
        %512 = vmatprep.mubr.f32.mxu0 0.0
        %513 = vmatmul.mubr.f32.gmra.mxu0 %v417
        %v514 = vpop.f32.mrf.mxu0
        %v515 = vadd.f32 %v441, %v514
        %v516 = vpop.f32.mrf.mxu0
        %517 = vmatprep.mubr.f32.mxu0 0.0
        %518 = vmatmul.mubr.f32.gmra.mxu0 %v418
        %v519 = vpop.f32.mrf.mxu0
        %v520 = vadd.f32 %v441, %v519
        %v521 = vpop.f32.mrf.mxu0
        %522 = vmatprep.mubr.f32.mxu0 0.0
        %523 = vmatmul.mubr.f32.gmra.mxu0 %v419
        %v524 = vpop.f32.mrf.mxu0
        %v525 = vadd.f32 %v441, %v524
        %v526 = vpop.f32.mrf.mxu0
        %527 = vdwg.mxu0
        %v528 = vpack.c.bf16 %v515, %v510
        %v529 = vpack.c.bf16 %v525, %v520
        %v532 = vunpack.c.l.b16 %v528
        %v533 = vunpack.c.h.b16 %v528
        %v534 = vunpack.c.l.b16 %v529
        %v535 = vunpack.c.h.b16 %v529
        %v536 = vpack.c.b16 %v532, %v532
        %v537 = vpack.c.b16 %v533, %v533
        %v538 = vpack.c.b16 %v534, %v534
        %v539 = vpack.c.b16 %v535, %v535
        %544 = vst [vmem:[#allocation2] sm:$0xf] %v536
        %545 = vst [vmem:[#allocation2 + $0x4] sm:$0xf] %v537
        %546 = vst [vmem:[#allocation2 + $0x8] sm:$0xf] %v538
        %547 = vst [vmem:[#allocation2 + $0xc] sm:$0xf] %v539
        %548 = vst [vmem:[#allocation3] sm:$0xff] 0.0
        %549 = vst [vmem:[#allocation3 + $0x8] sm:$0xff] 0.0
      $region64: #{crystal_gcn_forward.1} parent=59 // pred_fallthru
        _
      %v550 = vld [vmem:[%s403] sm:$0xff]
      %v551 = vld [vmem:[%s403 + $0x8] sm:$0xff]
      %v552 = vld [vmem:[%s403 + $0x10] sm:$0xff]
      %v553 = vld [vmem:[%s403 + $0x18] sm:$0xff]
      %v554 = vld [vmem:[%s403 + $0x20] sm:$0xff]
      %v555 = vld [vmem:[%s403 + $0x28] sm:$0xff]
      %v556 = vld [vmem:[%s403 + $0x30] sm:$0xff]
      %v557 = vld [vmem:[%s403 + $0x38] sm:$0xff]
      %v558 = vld [vmem:[%s403 + $0x40] sm:$0xff]
      %v559 = vld [vmem:[%s403 + $0x48] sm:$0xff]
      %v560 = vld [vmem:[%s403 + $0x50] sm:$0xff]
      %v561 = vld [vmem:[%s403 + $0x58] sm:$0xff]
      %v562 = vld [vmem:[%s403 + $0x60] sm:$0xff]
      %v563 = vld [vmem:[%s403 + $0x68] sm:$0xff]
      %v564 = vld [vmem:[%s403 + $0x70] sm:$0xff]
      %v565 = vld [vmem:[%s403 + $0x78] sm:$0xff]
      %v566 = vld [vmem:[%s6] sm:$0xff]
      %v567 = vld [vmem:[%s6 + $0x8] sm:$0xff]
      %v568 = vld [vmem:[%s6 + $0x10] sm:$0xff]
      %v569 = vld [vmem:[%s6 + $0x18] sm:$0xff]
      %v570 = vld [vmem:[%s6 + $0x20] sm:$0xff]
      %v571 = vld [vmem:[%s6 + $0x28] sm:$0xff]
      %v572 = vld [vmem:[%s6 + $0x30] sm:$0xff]
      %v573 = vld [vmem:[%s6 + $0x38] sm:$0xff]
      %v574 = vld [vmem:[%s6 + $0x40] sm:$0xff]
      %v575 = vld [vmem:[%s6 + $0x48] sm:$0xff]
      %v576 = vld [vmem:[%s6 + $0x50] sm:$0xff]
      %v577 = vld [vmem:[%s6 + $0x58] sm:$0xff]
      %v578 = vld [vmem:[%s6 + $0x60] sm:$0xff]
      %v579 = vld [vmem:[%s6 + $0x68] sm:$0xff]
      %v580 = vld [vmem:[%s6 + $0x70] sm:$0xff]
      %v581 = vld [vmem:[%s6 + $0x78] sm:$0xff]
      %v582 = vld [vmem:[%s7] sm:$0x1]
      %v584 = vlaneseq
      %v585 = vshrl.u32 %v584, 7
      %v586 = vsub.s32 0, %v585
      %v587 = vrot.slane %v582, %v586
      %589 = vmatprep.subr.mxu0 0.0
      %590 = vmatpush1.msra.mxu0 %v581
      %591 = vmatprep.subr.mxu0 0.0
      %592 = vmatpush1.msra.mxu0 %v580
      %593 = vmatprep.subr.mxu0 0.0
      %594 = vmatpush1.msra.mxu0 %v579
      %595 = vmatprep.subr.mxu0 0.0
      %596 = vmatpush1.msra.mxu0 %v578
      %597 = vmatprep.subr.mxu0 0.0
      %598 = vmatpush1.msra.mxu0 %v577
      %599 = vmatprep.subr.mxu0 0.0
      %600 = vmatpush1.msra.mxu0 %v576
      %601 = vmatprep.subr.mxu0 0.0
      %602 = vmatpush1.msra.mxu0 %v575
      %603 = vmatprep.subr.mxu0 0.0
      %604 = vmatpush1.msra.mxu0 %v574
      %605 = vmatprep.subr.mxu0 0.0
      %606 = vmatpush1.msra.mxu0 %v573
      %607 = vmatprep.subr.mxu0 0.0
      %608 = vmatpush1.msra.mxu0 %v572
      %609 = vmatprep.subr.mxu0 0.0
      %610 = vmatpush1.msra.mxu0 %v571
      %611 = vmatprep.subr.mxu0 0.0
      %612 = vmatpush1.msra.mxu0 %v570
      %613 = vmatprep.subr.mxu0 0.0
      %614 = vmatpush1.msra.mxu0 %v569
      %615 = vmatprep.subr.mxu0 0.0
      %616 = vmatpush1.msra.mxu0 %v568
      %617 = vmatprep.subr.mxu0 0.0
      %618 = vmatpush1.msra.mxu0 %v567
      %619 = vmatprep.subr.mxu0 0.0
      %620 = vmatpush1.msra.mxu0 %v566
      %621 = vmatprep.subr.mxu0 0.0
      %622 = vmatpush2.msra.mxu0 0.0
      %623 = vmatprep.subr.mxu0 0.0
      %624 = vmatpush2.msra.mxu0 0.0
      %625 = vmatprep.subr.mxu0 0.0
      %626 = vmatpush2.msra.mxu0 0.0
      %627 = vmatprep.subr.mxu0 0.0
      %628 = vmatpush2.msra.mxu0 0.0
      %629 = vmatprep.subr.mxu0 0.0
      %630 = vmatpush2.msra.mxu0 0.0
      %631 = vmatprep.subr.mxu0 0.0
      %632 = vmatpush2.msra.mxu0 0.0
      %633 = vmatprep.subr.mxu0 0.0
      %634 = vmatpush2.msra.mxu0 0.0
      %635 = vmatprep.subr.mxu0 0.0
      %636 = vmatpush2.msra.mxu0 0.0
      %637 = vmatprep.subr.mxu0 0.0
      %638 = vmatpush2.msra.mxu0 0.0
      %639 = vmatprep.subr.mxu0 0.0
      %640 = vmatpush2.msra.mxu0 0.0
      %641 = vmatprep.subr.mxu0 0.0
      %642 = vmatpush2.msra.mxu0 0.0
      %643 = vmatprep.subr.mxu0 0.0
      %644 = vmatpush2.msra.mxu0 0.0
      %645 = vmatprep.subr.mxu0 0.0
      %646 = vmatpush2.msra.mxu0 0.0
      %647 = vmatprep.subr.mxu0 0.0
      %648 = vmatpush2.msra.mxu0 0.0
      %649 = vmatprep.subr.mxu0 0.0
      %650 = vmatpush2.msra.mxu0 0.0
      %651 = vmatprep.subr.mxu0 0.0
      %652 = vmatpush2.msra.mxu0 0.0
      %653 = vmatprep.mubr.f32.mxu0 0.0
      %654 = vmatmul.mubr.f32.gmra.mxu0 %v550
      %v655 = vpop.f32.mrf.mxu0
      %v656 = vadd.f32 %v587, %v655
      %v657 = vpop.f32.mrf.mxu0
      %658 = vmatprep.mubr.f32.mxu0 0.0
      %659 = vmatmul.mubr.f32.gmra.mxu0 %v551
      %v660 = vpop.f32.mrf.mxu0
      %v661 = vadd.f32 %v587, %v660
      %v662 = vpop.f32.mrf.mxu0
      %663 = vmatprep.mubr.f32.mxu0 0.0
      %664 = vmatmul.mubr.f32.gmra.mxu0 %v552
      %v665 = vpop.f32.mrf.mxu0
      %v666 = vadd.f32 %v587, %v665
      %v667 = vpop.f32.mrf.mxu0
      %668 = vmatprep.mubr.f32.mxu0 0.0
      %669 = vmatmul.mubr.f32.gmra.mxu0 %v553
      %v670 = vpop.f32.mrf.mxu0
      %v671 = vadd.f32 %v587, %v670
      %v672 = vpop.f32.mrf.mxu0
      %673 = vmatprep.mubr.f32.mxu0 0.0
      %674 = vmatmul.mubr.f32.gmra.mxu0 %v554
      %v675 = vpop.f32.mrf.mxu0
      %v676 = vadd.f32 %v587, %v675
      %v677 = vpop.f32.mrf.mxu0
      %678 = vmatprep.mubr.f32.mxu0 0.0
      %679 = vmatmul.mubr.f32.gmra.mxu0 %v555
      %v680 = vpop.f32.mrf.mxu0
      %v681 = vadd.f32 %v587, %v680
      %v682 = vpop.f32.mrf.mxu0
      %683 = vmatprep.mubr.f32.mxu0 0.0
      %684 = vmatmul.mubr.f32.gmra.mxu0 %v556
      %v685 = vpop.f32.mrf.mxu0
      %v686 = vadd.f32 %v587, %v685
      %v687 = vpop.f32.mrf.mxu0
      %688 = vmatprep.mubr.f32.mxu0 0.0
      %689 = vmatmul.mubr.f32.gmra.mxu0 %v557
      %v690 = vpop.f32.mrf.mxu0
      %v691 = vadd.f32 %v587, %v690
      %v692 = vpop.f32.mrf.mxu0
      %693 = vmatprep.mubr.f32.mxu0 0.0
      %694 = vmatmul.mubr.f32.gmra.mxu0 %v558
      %v695 = vpop.f32.mrf.mxu0
      %v696 = vadd.f32 %v587, %v695
      %v697 = vpop.f32.mrf.mxu0
      %698 = vmatprep.mubr.f32.mxu0 0.0
      %699 = vmatmul.mubr.f32.gmra.mxu0 %v559
      %v700 = vpop.f32.mrf.mxu0
      %v701 = vadd.f32 %v587, %v700
      %v702 = vpop.f32.mrf.mxu0
      %703 = vmatprep.mubr.f32.mxu0 0.0
      %704 = vmatmul.mubr.f32.gmra.mxu0 %v560
      %v705 = vpop.f32.mrf.mxu0
      %v706 = vadd.f32 %v587, %v705
      %v707 = vpop.f32.mrf.mxu0
      %708 = vmatprep.mubr.f32.mxu0 0.0
      %709 = vmatmul.mubr.f32.gmra.mxu0 %v561
      %v710 = vpop.f32.mrf.mxu0
      %v711 = vadd.f32 %v587, %v710
      %v712 = vpop.f32.mrf.mxu0
      %713 = vmatprep.mubr.f32.mxu0 0.0
      %714 = vmatmul.mubr.f32.gmra.mxu0 %v562
      %v715 = vpop.f32.mrf.mxu0
      %v716 = vadd.f32 %v587, %v715
      %v717 = vpop.f32.mrf.mxu0
      %718 = vmatprep.mubr.f32.mxu0 0.0
      %719 = vmatmul.mubr.f32.gmra.mxu0 %v563
      %v720 = vpop.f32.mrf.mxu0
      %v721 = vadd.f32 %v587, %v720
      %v722 = vpop.f32.mrf.mxu0
      %723 = vmatprep.mubr.f32.mxu0 0.0
      %724 = vmatmul.mubr.f32.gmra.mxu0 %v564
      %v725 = vpop.f32.mrf.mxu0
      %v726 = vadd.f32 %v587, %v725
      %v727 = vpop.f32.mrf.mxu0
      %728 = vmatprep.mubr.f32.mxu0 0.0
      %729 = vmatmul.mubr.f32.gmra.mxu0 %v565
      %v730 = vpop.f32.mrf.mxu0
      %v731 = vadd.f32 %v587, %v730
      %v732 = vpop.f32.mrf.mxu0
      %733 = vdwg.mxu0
      %v734 = vld [vmem:[%s394] sm:$0xff]
      %v735 = vld [vmem:[%s394 + $0x8] sm:$0xff]
      %v736 = vld [vmem:[%s394 + $0x10] sm:$0xff]
      %v737 = vld [vmem:[%s394 + $0x18] sm:$0xff]
      %v738 = vld [vmem:[%s394 + $0x20] sm:$0xff]
      %v739 = vld [vmem:[%s394 + $0x28] sm:$0xff]
      %v740 = vld [vmem:[%s394 + $0x30] sm:$0xff]
      %v741 = vld [vmem:[%s394 + $0x38] sm:$0xff]
      %v742 = vld [vmem:[%s394 + $0x40] sm:$0xff]
      %v743 = vld [vmem:[%s394 + $0x48] sm:$0xff]
      %v744 = vld [vmem:[%s394 + $0x50] sm:$0xff]
      %v745 = vld [vmem:[%s394 + $0x58] sm:$0xff]
      %v746 = vld [vmem:[%s394 + $0x60] sm:$0xff]
      %v747 = vld [vmem:[%s394 + $0x68] sm:$0xff]
      %v748 = vld [vmem:[%s394 + $0x70] sm:$0xff]
      %v749 = vld [vmem:[%s394 + $0x78] sm:$0xff]
      %v750 = vlaneseq
      %v751 = vand.u32 %v750, 127
      %752 = vset.pattern.permute.xlu0 0
      %753 = vperm.xlu0 %752, %v734
      %v754 = vpop.permute.xlu0 %753
      %755 = vset.pattern.permute.xlu0 0
      %756 = vperm.xlu0 %755, %v735
      %v757 = vpop.permute.xlu0 %756
      %758 = vset.pattern.permute.xlu0 0
      %759 = vperm.xlu0 %758, %v736
      %v760 = vpop.permute.xlu0 %759
      %761 = vset.pattern.permute.xlu0 0
      %762 = vperm.xlu0 %761, %v737
      %v763 = vpop.permute.xlu0 %762
      %764 = vset.pattern.permute.xlu0 0
      %765 = vperm.xlu0 %764, %v738
      %v766 = vpop.permute.xlu0 %765
      %767 = vset.pattern.permute.xlu0 0
      %768 = vperm.xlu0 %767, %v739
      %v769 = vpop.permute.xlu0 %768
      %770 = vset.pattern.permute.xlu0 0
      %771 = vperm.xlu0 %770, %v740
      %v772 = vpop.permute.xlu0 %771
      %773 = vset.pattern.permute.xlu0 0
      %774 = vperm.xlu0 %773, %v741
      %v775 = vpop.permute.xlu0 %774
      %776 = vset.pattern.permute.xlu0 0
      %777 = vperm.xlu0 %776, %v742
      %v778 = vpop.permute.xlu0 %777
      %779 = vset.pattern.permute.xlu0 0
      %780 = vperm.xlu0 %779, %v743
      %v781 = vpop.permute.xlu0 %780
      %782 = vset.pattern.permute.xlu0 0
      %783 = vperm.xlu0 %782, %v744
      %v784 = vpop.permute.xlu0 %783
      %785 = vset.pattern.permute.xlu0 0
      %786 = vperm.xlu0 %785, %v745
      %v787 = vpop.permute.xlu0 %786
      %788 = vset.pattern.permute.xlu0 0
      %789 = vperm.xlu0 %788, %v746
      %v790 = vpop.permute.xlu0 %789
      %791 = vset.pattern.permute.xlu0 0
      %792 = vperm.xlu0 %791, %v747
      %v793 = vpop.permute.xlu0 %792
      %794 = vset.pattern.permute.xlu0 0
      %795 = vperm.xlu0 %794, %v748
      %v796 = vpop.permute.xlu0 %795
      %797 = vset.pattern.permute.xlu0 0
      %798 = vperm.xlu0 %797, %v749
      %v799 = vpop.permute.xlu0 %798
      %vm800 = vcmp.eq.s32.totalorder %v754, %v751
      %vm801 = vcmp.eq.s32.totalorder %v757, %v751
      %vm802 = vcmp.eq.s32.totalorder %v760, %v751
      %vm803 = vcmp.eq.s32.totalorder %v763, %v751
      %vm804 = vcmp.eq.s32.totalorder %v766, %v751
      %vm805 = vcmp.eq.s32.totalorder %v769, %v751
      %vm806 = vcmp.eq.s32.totalorder %v772, %v751
      %vm807 = vcmp.eq.s32.totalorder %v775, %v751
      %vm808 = vcmp.eq.s32.totalorder %v778, %v751
      %vm809 = vcmp.eq.s32.totalorder %v781, %v751
      %vm810 = vcmp.eq.s32.totalorder %v784, %v751
      %vm811 = vcmp.eq.s32.totalorder %v787, %v751
      %vm812 = vcmp.eq.s32.totalorder %v790, %v751
      %vm813 = vcmp.eq.s32.totalorder %v793, %v751
      %vm814 = vcmp.eq.s32.totalorder %v796, %v751
      %vm815 = vcmp.eq.s32.totalorder %v799, %v751
      %v816 = vsel %vm800, 1, 0
      %v817 = vsel %vm801, 1, 0
      %v818 = vsel %vm802, 1, 0
      %v819 = vsel %vm803, 1, 0
      %v820 = vsel %vm804, 1, 0
      %v821 = vsel %vm805, 1, 0
      %v822 = vsel %vm806, 1, 0
      %v823 = vsel %vm807, 1, 0
      %v824 = vsel %vm808, 1, 0
      %v825 = vsel %vm809, 1, 0
      %v826 = vsel %vm810, 1, 0
      %v827 = vsel %vm811, 1, 0
      %v828 = vsel %vm812, 1, 0
      %v829 = vsel %vm813, 1, 0
      %v830 = vsel %vm814, 1, 0
      %v831 = vsel %vm815, 1, 0
      %v832 = vcvt.s32.f32 %v816
      %v833 = vcvt.s32.f32 %v817
      %v834 = vcvt.s32.f32 %v818
      %v835 = vcvt.s32.f32 %v819
      %v836 = vcvt.s32.f32 %v820
      %v837 = vcvt.s32.f32 %v821
      %v838 = vcvt.s32.f32 %v822
      %v839 = vcvt.s32.f32 %v823
      %v840 = vcvt.s32.f32 %v824
      %v841 = vcvt.s32.f32 %v825
      %v842 = vcvt.s32.f32 %v826
      %v843 = vcvt.s32.f32 %v827
      %v844 = vcvt.s32.f32 %v828
      %v845 = vcvt.s32.f32 %v829
      %v846 = vcvt.s32.f32 %v830
      %v847 = vcvt.s32.f32 %v831
      %v848 = vpack.c.bf16 %v833, %v832
      %v849 = vpack.c.bf16 %v835, %v834
      %v850 = vpack.c.bf16 %v837, %v836
      %v851 = vpack.c.bf16 %v839, %v838
      %v852 = vpack.c.bf16 %v841, %v840
      %v853 = vpack.c.bf16 %v843, %v842
      %v854 = vpack.c.bf16 %v845, %v844
      %v855 = vpack.c.bf16 %v847, %v846
      %v856 = vld [vmem:[#allocation2] sm:$0xf]
      %v857 = vld [vmem:[#allocation2 + $0x4] sm:$0xf]
      %v858 = vld [vmem:[#allocation2 + $0x8] sm:$0xf]
      %v859 = vld [vmem:[#allocation2 + $0xc] sm:$0xf]
      %v864 = vunpack.c.l.b16 %v856
      %v865 = vunpack.c.l.b16 %v857
      %v866 = vunpack.c.l.b16 %v858
      %v867 = vunpack.c.l.b16 %v859
      %v868 = vpack.c.b16 %v865, %v864
      %v869 = vpack.c.b16 %v867, %v866
      %vm872 = vcmask 261120
      %v874 = vsel %vm872, %v848, 0
      %v877 = vsel %vm872, %v849, 0
      %v880 = vsel %vm872, %v850, 0
      %v883 = vsel %vm872, %v851, 0
      %v886 = vsel %vm872, %v852, 0
      %v889 = vsel %vm872, %v853, 0
      %v892 = vsel %vm872, %v854, 0
      %v895 = vsel %vm872, %v855, 0
      %897 = vmatprep.subr.bf16.mxu0 0
      %898 = vmatpush1.bf16.msra.mxu0 0
      %899 = vmatprep.subr.bf16.mxu0 0
      %900 = vmatpush1.bf16.msra.mxu0 0
      %901 = vmatprep.subr.bf16.mxu0 0
      %902 = vmatpush1.bf16.msra.mxu0 0
      %903 = vmatprep.subr.bf16.mxu0 0
      %904 = vmatpush1.bf16.msra.mxu0 0
      %905 = vmatprep.subr.bf16.mxu0 0
      %906 = vmatpush1.bf16.msra.mxu0 0
      %907 = vmatprep.subr.bf16.mxu0 0
      %908 = vmatpush1.bf16.msra.mxu0 0
      %909 = vmatprep.subr.bf16.mxu0 0
      %910 = vmatpush1.bf16.msra.mxu0 %v869
      %911 = vmatprep.subr.bf16.mxu0 0
      %912 = vmatpush1.bf16.msra.mxu0 %v868
      %913 = vmatprep.subr.bf16.mxu0 0
      %914 = vmatpush2.bf16.msra.mxu0 0
      %915 = vmatprep.subr.bf16.mxu0 0
      %916 = vmatpush2.bf16.msra.mxu0 0
      %917 = vmatprep.subr.bf16.mxu0 0
      %918 = vmatpush2.bf16.msra.mxu0 0
      %919 = vmatprep.subr.bf16.mxu0 0
      %920 = vmatpush2.bf16.msra.mxu0 0
      %921 = vmatprep.subr.bf16.mxu0 0
      %922 = vmatpush2.bf16.msra.mxu0 0
      %923 = vmatprep.subr.bf16.mxu0 0
      %924 = vmatpush2.bf16.msra.mxu0 0
      %925 = vmatprep.subr.bf16.mxu0 0
      %926 = vmatpush2.bf16.msra.mxu0 0
      %927 = vmatprep.subr.bf16.mxu0 0
      %928 = vmatpush2.bf16.msra.mxu0 0
      %929 = vmatprep.mubr.bf16.mxu0 0
      %930 = vmatmul.mubr.bf16.gmra.mxu0 %v874
      %v931 = vpop.f32.mrf.mxu0
      %v932 = vadd.f32 0.0, %v931
      %v933 = vpop.f32.mrf.mxu0
      %v934 = vpop.f32.mrf.mxu0
      %v935 = vadd.f32 0.0, %v934
      %v936 = vpop.f32.mrf.mxu0
      %937 = vmatprep.mubr.bf16.mxu0 0
      %938 = vmatmul.mubr.bf16.gmra.mxu0 %v877
      %v939 = vpop.f32.mrf.mxu0
      %v940 = vadd.f32 0.0, %v939
      %v941 = vpop.f32.mrf.mxu0
      %v942 = vpop.f32.mrf.mxu0
      %v943 = vadd.f32 0.0, %v942
      %v944 = vpop.f32.mrf.mxu0
      %945 = vmatprep.mubr.bf16.mxu0 0
      %946 = vmatmul.mubr.bf16.gmra.mxu0 %v880
      %v947 = vpop.f32.mrf.mxu0
      %v948 = vadd.f32 0.0, %v947
      %v949 = vpop.f32.mrf.mxu0
      %v950 = vpop.f32.mrf.mxu0
      %v951 = vadd.f32 0.0, %v950
      %v952 = vpop.f32.mrf.mxu0
      %953 = vmatprep.mubr.bf16.mxu0 0
      %954 = vmatmul.mubr.bf16.gmra.mxu0 %v883
      %v955 = vpop.f32.mrf.mxu0
      %v956 = vadd.f32 0.0, %v955
      %v957 = vpop.f32.mrf.mxu0
      %v958 = vpop.f32.mrf.mxu0
      %v959 = vadd.f32 0.0, %v958
      %v960 = vpop.f32.mrf.mxu0
      %961 = vmatprep.mubr.bf16.mxu0 0
      %962 = vmatmul.mubr.bf16.gmra.mxu0 %v886
      %v963 = vpop.f32.mrf.mxu0
      %v964 = vadd.f32 0.0, %v963
      %v965 = vpop.f32.mrf.mxu0
      %v966 = vpop.f32.mrf.mxu0
      %v967 = vadd.f32 0.0, %v966
      %v968 = vpop.f32.mrf.mxu0
      %969 = vmatprep.mubr.bf16.mxu0 0
      %970 = vmatmul.mubr.bf16.gmra.mxu0 %v889
      %v971 = vpop.f32.mrf.mxu0
      %v972 = vadd.f32 0.0, %v971
      %v973 = vpop.f32.mrf.mxu0
      %v974 = vpop.f32.mrf.mxu0
      %v975 = vadd.f32 0.0, %v974
      %v976 = vpop.f32.mrf.mxu0
      %977 = vmatprep.mubr.bf16.mxu0 0
      %978 = vmatmul.mubr.bf16.gmra.mxu0 %v892
      %v979 = vpop.f32.mrf.mxu0
      %v980 = vadd.f32 0.0, %v979
      %v981 = vpop.f32.mrf.mxu0
      %v982 = vpop.f32.mrf.mxu0
      %v983 = vadd.f32 0.0, %v982
      %v984 = vpop.f32.mrf.mxu0
      %985 = vmatprep.mubr.bf16.mxu0 0
      %986 = vmatmul.mubr.bf16.gmra.mxu0 %v895
      %v987 = vpop.f32.mrf.mxu0
      %v988 = vadd.f32 0.0, %v987
      %v989 = vpop.f32.mrf.mxu0
      %v990 = vpop.f32.mrf.mxu0
      %v991 = vadd.f32 0.0, %v990
      %v992 = vpop.f32.mrf.mxu0
      %993 = vdwg.mxu0
      %v994 = vmul.f32 %v932, %v656
      %v995 = vmul.f32 %v935, %v661
      %v996 = vmul.f32 %v940, %v666
      %v997 = vmul.f32 %v943, %v671
      %v998 = vmul.f32 %v948, %v676
      %v999 = vmul.f32 %v951, %v681
      %v1000 = vmul.f32 %v956, %v686
      %v1001 = vmul.f32 %v959, %v691
      %v1002 = vmul.f32 %v964, %v696
      %v1003 = vmul.f32 %v967, %v701
      %v1004 = vmul.f32 %v972, %v706
      %v1005 = vmul.f32 %v975, %v711
      %v1006 = vmul.f32 %v980, %v716
      %v1007 = vmul.f32 %v983, %v721
      %v1008 = vmul.f32 %v988, %v726
      %v1009 = vmul.f32 %v991, %v731
      %v1010 = vpack.c.bf16 %v995, %v994
      %v1011 = vpack.c.bf16 %v997, %v996
      %v1012 = vpack.c.bf16 %v999, %v998
      %v1013 = vpack.c.bf16 %v1001, %v1000
      %v1014 = vpack.c.bf16 %v1003, %v1002
      %v1015 = vpack.c.bf16 %v1005, %v1004
      %v1016 = vpack.c.bf16 %v1007, %v1006
      %v1017 = vpack.c.bf16 %v1009, %v1008
      %s1018 = smul.u32 %s25, 16
      %v1019 = vld [vmem:[%s398] sm:$0x1]
      %v1020 = vlaneseq
      %v1021 = vshrl.u32 %v1020, 7
      %v1022 = vadd.s32 %v1021, 8
      %v1023 = vstv %s1018
      %v1024 = vadd.s32 %v1021, %v1023
      %v1025 = vadd.s32 %v1022, %v1023
      %v1026 = vlaneseq
      %v1027 = vshrl.u32 %v1026, 7
      %v1028 = vsub.s32 0, %v1027
      %v1029 = vrot.slane %v1019, %v1028
      %vm1030 = vcmp.eq.s32.totalorder %v1029, %v1024
      %vm1031 = vcmp.eq.s32.totalorder %v1029, %v1025
      %v1032 = vsel %vm1030, 1, 0
      %v1033 = vsel %vm1031, 1, 0
      %v1034 = vcvt.s32.f32 %v1032
      %v1035 = vcvt.s32.f32 %v1033
      %v1036 = vpack.c.bf16 %v1035, %v1034
      %v1037 = vld [vmem:[#allocation3] sm:$0xff]
      %v1038 = vld [vmem:[#allocation3 + $0x8] sm:$0xff]
      %1039 = vmatprep.subr.bf16.mxu0 0
      %1040 = vmatpush1.bf16.msra.mxu0 %v1017
      %1041 = vmatprep.subr.bf16.mxu0 0
      %1042 = vmatpush1.bf16.msra.mxu0 %v1016
      %1043 = vmatprep.subr.bf16.mxu0 0
      %1044 = vmatpush1.bf16.msra.mxu0 %v1015
      %1045 = vmatprep.subr.bf16.mxu0 0
      %1046 = vmatpush1.bf16.msra.mxu0 %v1014
      %1047 = vmatprep.subr.bf16.mxu0 0
      %1048 = vmatpush1.bf16.msra.mxu0 %v1013
      %1049 = vmatprep.subr.bf16.mxu0 0
      %1050 = vmatpush1.bf16.msra.mxu0 %v1012
      %1051 = vmatprep.subr.bf16.mxu0 0
      %1052 = vmatpush1.bf16.msra.mxu0 %v1011
      %1053 = vmatprep.subr.bf16.mxu0 0
      %1054 = vmatpush1.bf16.msra.mxu0 %v1010
      %1055 = vmatprep.subr.bf16.mxu0 0
      %1056 = vmatpush2.bf16.msra.mxu0 0
      %1057 = vmatprep.subr.bf16.mxu0 0
      %1058 = vmatpush2.bf16.msra.mxu0 0
      %1059 = vmatprep.subr.bf16.mxu0 0
      %1060 = vmatpush2.bf16.msra.mxu0 0
      %1061 = vmatprep.subr.bf16.mxu0 0
      %1062 = vmatpush2.bf16.msra.mxu0 0
      %1063 = vmatprep.subr.bf16.mxu0 0
      %1064 = vmatpush2.bf16.msra.mxu0 0
      %1065 = vmatprep.subr.bf16.mxu0 0
      %1066 = vmatpush2.bf16.msra.mxu0 0
      %1067 = vmatprep.subr.bf16.mxu0 0
      %1068 = vmatpush2.bf16.msra.mxu0 0
      %1069 = vmatprep.subr.bf16.mxu0 0
      %1070 = vmatpush2.bf16.msra.mxu0 0
      %1071 = vmatprep.mubr.bf16.mxu0 0
      %1072 = vmatmul.mubr.bf16.gmra.mxu0 %v1036
      %v1073 = vpop.f32.mrf.mxu0
      %v1074 = vadd.f32 0.0, %v1073
      %v1075 = vpop.f32.mrf.mxu0
      %v1076 = vpop.f32.mrf.mxu0
      %v1077 = vadd.f32 0.0, %v1076
      %v1078 = vpop.f32.mrf.mxu0
      %1079 = vdwg.mxu0
      %v1080 = vadd.f32 %v1037, %v1074
      %v1081 = vadd.f32 %v1038, %v1077
      %1082 = vst [vmem:[#allocation3] sm:$0xff] %v1080
      %1083 = vst [vmem:[#allocation3 + $0x8] sm:$0xff] %v1081
      %p1084 = scmp.eq.s32.totalorder %s26, 2
      // Predicated region
      $region65: #{crystal_gcn_forward.1} parent=59 // pred_check
        %p1085 = pneg %p1084
      $region66: #{crystal_gcn_forward.1} parent=59 // pred_check_branch
        %1087 = sbr.rel (%p1085) target = $region68
      $region67: #{crystal_gcn_forward.1} parent=59 // pred_region
        %v1088 = vld [vmem:[#allocation3] sm:$0xff]
        %v1089 = vld [vmem:[#allocation3 + $0x8] sm:$0xff]
        %v1090 = vld [vmem:[%s8] sm:$0xff]
        %v1091 = vld [vmem:[%s8 + $0x8] sm:$0xff]
        %v1092 = vld [vmem:[%s8 + $0x10] sm:$0xff]
        %v1093 = vld [vmem:[%s8 + $0x18] sm:$0xff]
        %v1094 = vld [vmem:[%s8 + $0x20] sm:$0xff]
        %v1095 = vld [vmem:[%s8 + $0x28] sm:$0xff]
        %v1096 = vld [vmem:[%s8 + $0x30] sm:$0xff]
        %v1097 = vld [vmem:[%s8 + $0x38] sm:$0xff]
        %v1098 = vld [vmem:[%s8 + $0x40] sm:$0xff]
        %v1099 = vld [vmem:[%s8 + $0x48] sm:$0xff]
        %v1100 = vld [vmem:[%s8 + $0x50] sm:$0xff]
        %v1101 = vld [vmem:[%s8 + $0x58] sm:$0xff]
        %v1102 = vld [vmem:[%s8 + $0x60] sm:$0xff]
        %v1103 = vld [vmem:[%s8 + $0x68] sm:$0xff]
        %v1104 = vld [vmem:[%s8 + $0x70] sm:$0xff]
        %v1105 = vld [vmem:[%s8 + $0x78] sm:$0xff]
        %v1106 = vld [vmem:[%s9] sm:$0x1]
        %v1108 = vlaneseq
        %v1109 = vshrl.u32 %v1108, 7
        %v1110 = vsub.s32 0, %v1109
        %v1111 = vrot.slane %v1106, %v1110
        %1113 = vmatprep.subr.mxu0 0.0
        %1114 = vmatpush1.msra.mxu0 %v1105
        %1115 = vmatprep.subr.mxu0 0.0
        %1116 = vmatpush1.msra.mxu0 %v1104
        %1117 = vmatprep.subr.mxu0 0.0
        %1118 = vmatpush1.msra.mxu0 %v1103
        %1119 = vmatprep.subr.mxu0 0.0
        %1120 = vmatpush1.msra.mxu0 %v1102
        %1121 = vmatprep.subr.mxu0 0.0
        %1122 = vmatpush1.msra.mxu0 %v1101
        %1123 = vmatprep.subr.mxu0 0.0
        %1124 = vmatpush1.msra.mxu0 %v1100
        %1125 = vmatprep.subr.mxu0 0.0
        %1126 = vmatpush1.msra.mxu0 %v1099
        %1127 = vmatprep.subr.mxu0 0.0
        %1128 = vmatpush1.msra.mxu0 %v1098
        %1129 = vmatprep.subr.mxu0 0.0
        %1130 = vmatpush1.msra.mxu0 %v1097
        %1131 = vmatprep.subr.mxu0 0.0
        %1132 = vmatpush1.msra.mxu0 %v1096
        %1133 = vmatprep.subr.mxu0 0.0
        %1134 = vmatpush1.msra.mxu0 %v1095
        %1135 = vmatprep.subr.mxu0 0.0
        %1136 = vmatpush1.msra.mxu0 %v1094
        %1137 = vmatprep.subr.mxu0 0.0
        %1138 = vmatpush1.msra.mxu0 %v1093
        %1139 = vmatprep.subr.mxu0 0.0
        %1140 = vmatpush1.msra.mxu0 %v1092
        %1141 = vmatprep.subr.mxu0 0.0
        %1142 = vmatpush1.msra.mxu0 %v1091
        %1143 = vmatprep.subr.mxu0 0.0
        %1144 = vmatpush1.msra.mxu0 %v1090
        %1145 = vmatprep.subr.mxu0 0.0
        %1146 = vmatpush2.msra.mxu0 0.0
        %1147 = vmatprep.subr.mxu0 0.0
        %1148 = vmatpush2.msra.mxu0 0.0
        %1149 = vmatprep.subr.mxu0 0.0
        %1150 = vmatpush2.msra.mxu0 0.0
        %1151 = vmatprep.subr.mxu0 0.0
        %1152 = vmatpush2.msra.mxu0 0.0
        %1153 = vmatprep.subr.mxu0 0.0
        %1154 = vmatpush2.msra.mxu0 0.0
        %1155 = vmatprep.subr.mxu0 0.0
        %1156 = vmatpush2.msra.mxu0 0.0
        %1157 = vmatprep.subr.mxu0 0.0
        %1158 = vmatpush2.msra.mxu0 0.0
        %1159 = vmatprep.subr.mxu0 0.0
        %1160 = vmatpush2.msra.mxu0 0.0
        %1161 = vmatprep.subr.mxu0 0.0
        %1162 = vmatpush2.msra.mxu0 0.0
        %1163 = vmatprep.subr.mxu0 0.0
        %1164 = vmatpush2.msra.mxu0 0.0
        %1165 = vmatprep.subr.mxu0 0.0
        %1166 = vmatpush2.msra.mxu0 0.0
        %1167 = vmatprep.subr.mxu0 0.0
        %1168 = vmatpush2.msra.mxu0 0.0
        %1169 = vmatprep.subr.mxu0 0.0
        %1170 = vmatpush2.msra.mxu0 0.0
        %1171 = vmatprep.subr.mxu0 0.0
        %1172 = vmatpush2.msra.mxu0 0.0
        %1173 = vmatprep.subr.mxu0 0.0
        %1174 = vmatpush2.msra.mxu0 0.0
        %1175 = vmatprep.subr.mxu0 0.0
        %1176 = vmatpush2.msra.mxu0 0.0
        %1177 = vmatprep.mubr.f32.mxu0 0.0
        %1178 = vmatmul.mubr.f32.gmra.mxu0 %v1088
        %v1179 = vpop.f32.mrf.mxu0
        %v1180 = vadd.f32 %v1111, %v1179
        %v1181 = vpop.f32.mrf.mxu0
        %1182 = vmatprep.mubr.f32.mxu0 0.0
        %1183 = vmatmul.mubr.f32.gmra.mxu0 %v1089
        %v1184 = vpop.f32.mrf.mxu0
        %v1185 = vadd.f32 %v1111, %v1184
        %v1186 = vpop.f32.mrf.mxu0
        %1187 = vdwg.mxu0
        %1188 = vst [vmem:[%s409] sm:$0xff] %v1180
        %1189 = vst [vmem:[%s409 + $0x8] sm:$0xff] %v1185
      $region68: #{crystal_gcn_forward.1} parent=59 // pred_fallthru
        _
      %s1190 = smul.u32 2, %s25
      %p1191 = scmp.lt.s32.totalorder %s1190, 3
      %s1192 = scalar_select %p1191, %s1190, 3
      %s1193 = smul.addr %s1192, 8
      %s1194 = scalar_lea.vmem %s10, %s1193
      // Predicated region
      $region69: #{crystal_gcn_forward.1} parent=59 // pred_check
        %p1195 = pneg %p276
      $region70: #{crystal_gcn_forward.1} parent=59 // pred_check_branch
        %1197 = sbr.rel (%p1195) target = $region72
      $region71: #{crystal_gcn_forward.1} parent=59 // pred_region
        %s1198 = smul.u32 2, %s25
      $region72: #{crystal_gcn_forward.1} parent=59 // pred_fallthru
        _
    $region60: #{crystal_gcn_forward.1} parent=5 // pred_fallthru
      _
    %p1199 = scmp.le.s32.totalorder 2, %s16
    // Predicated region
    $region73: #{crystal_gcn_forward.1} parent=5 // pred_check
      %p1200 = pneg %p1199
    $region74: #{crystal_gcn_forward.1} parent=5 // pred_check_branch
      %1202 = sbr.rel (%p1200) target = $region76
    $region75: #{crystal_gcn_forward.1} parent=5 // pred_region
      %s1203 = ssub.s32 %s16, 2
      // Predicated region
      $region77: #{crystal_gcn_forward.1} parent=75 // pred_check
        %p1204 = pneg %p282
      $region78: #{crystal_gcn_forward.1} parent=75 // pred_check_branch
        %1206 = sbr.rel (%p1204) target = $region80
      $region79: #{crystal_gcn_forward.1} parent=75 // pred_region
        %s1207 = smul.u32 2, %s27
        %p1208 = scmp.lt.s32.totalorder %s1207, 3
        %s1209 = scalar_select %p1208, %s1207, 3
        %s1210 = smul.addr %s1209, 8
        %s1211 = scalar_lea.vmem %s10, %s1210
      $region80: #{crystal_gcn_forward.1} parent=75 // pred_fallthru
        _
    $region76: #{crystal_gcn_forward.1} parent=5 // pred_fallthru
      _
  $region6: #{crystal_gcn_forward.1} parent=0 // loop_footer
    %s20 = sadd.s32 1, %s16
  $region7: #{crystal_gcn_forward.1} parent=0 // loop_footer_branch
    %15 = sbr.rel target = $region3
  $region8: #{crystal_gcn_forward.1} parent=0 // loop_exit
    _

</llo_original>
